<compile_context>
chip_gen: v7x
topology: tpu7x:2x2x1
jax: 0.10.0
libtpu: 0.0.40
codegen_flags: <defaults>
</compile_context>

<pallas_src>
import functools

import jax
import jax.numpy as jnp
from jax.experimental import pallas as pl
from jax.experimental.pallas import tpu as pltpu


def transformer_block_kernel(
    x_ref,                       # (tb, Dp)   packed input rows for this grid step
    wqkv_ref,                    # (Dp, 3Dp)  block-diagonal [Wq^T*scale | Wk^T | Wv^T]
    bqkv_ref,                    # (1, 3Dp)
    wo_ref,                      # (Dp, Dp)   block-diagonal out_proj^T
    bo_ref,                      # (1, Dp)
    w1_ref,                      # (Dp, P*H)  packed FFN Linear1^T
    b1_ref,                      # (1, P*H)
    w2_ref,                      # (P*H, Dp)  packed FFN Linear2^T
    b2_ref,                      # (1, Dp)
    scale1_ref, shift1_ref,      # (1, Dp)    BatchNorm1d #1 folded (eval mode), packed layout
    scale2_ref, shift2_ref,      # (1, Dp)    BatchNorm1d #2 folded (eval mode), packed layout
    o_ref,                       # (tb, Dp)
    *, seq_len, block_lanes,
):
    s, be = seq_len, block_lanes
    x = x_ref[...].astype(jnp.float32)                     # (tb, Dp)
    dp = x.shape[1]

    # ---- fused QKV projection: one MXU matmul against the block-diagonal weight ----
    wqkv = wqkv_ref[...]
    qkv = jnp.dot(x.astype(wqkv.dtype), wqkv,
                  preferred_element_type=jnp.float32) + bqkv_ref[...]
    q = qkv[:, 0 * dp:1 * dp]
    k = qkv[:, 1 * dp:2 * dp]
    v = qkv[:, 2 * dp:3 * dp]

    # ---- head_dim == 1 attention, fully lane-vectorized ----
    # Lane layout: blocks of `be` lanes per key/query token.  Keys/values at relative
    # token offset `delta` are obtained by rotating whole token blocks (XLU roll);
    # softmax reductions over keys are then purely per-lane (VPU/EUP).
    def rot(a, delta):
        return pltpu.roll(a, shift=delta * be, axis=1) if delta else a

    m = q * k                                              # running per-(query, head) max
    for delta in range(1, s):
        m = jnp.maximum(m, q * rot(k, delta))
    denom = jnp.zeros_like(m)
    acc = jnp.zeros_like(m)
    for delta in range(s):
        p = jnp.exp(q * rot(k, delta) - m)
        denom = denom + p
        acc = acc + p * rot(v, delta)
    attn = acc * pl.reciprocal(denom, approx=True)         # (tb, Dp), same layout as x

    # ---- output projection (block-diagonal, one matmul) ----
    wo = wo_ref[...]
    attn_out = jnp.dot(attn.astype(wo.dtype), wo,
                       preferred_element_type=jnp.float32) + bo_ref[...]

    # dropout == identity (eval); BatchNorm1d folded into per-feature scale/shift
    y1 = (attn_out + x) * scale1_ref[...] + shift1_ref[...]

    # ---- feed-forward: Linear -> ReLU -> Linear (packed, one matmul each) ----
    w1 = w1_ref[...]
    h = jnp.dot(y1.astype(w1.dtype), w1,
                preferred_element_type=jnp.float32) + b1_ref[...]
    h = jnp.maximum(h, 0.0)
    w2 = w2_ref[...]
    f = jnp.dot(h.astype(w2.dtype), w2,
                preferred_element_type=jnp.float32) + b2_ref[...]

    o_ref[...] = ((f + y1) * scale2_ref[...] + shift2_ref[...]).astype(o_ref.dtype)


def _pick_block_rows(rows, target):
    """Largest tile <= target that divides rows (multiple of 8 when tiling)."""
    if rows <= target:
        return rows
    t = (min(target, rows // 2) // 8) * 8   # keep >=2 grid steps when tiling (v7x: 2 TCs)
    while t >= 8:
        if rows % t == 0:
            return t
        t -= 8
    return rows


def transformer_block(x, p, *, num_heads, block_rows=128, param_dtype=jnp.float32):
    """x: (B, D). p: PyTorch-layout parameters. Eval-mode forward."""
    B, D = x.shape
    E = p["out_proj_w"].shape[0]
    # TransformerBlock always builds SelfAttn1d(embed_multi=1) => embed_dim == num_heads, head_dim == 1.
    assert E == num_heads, "embed_dim must equal num_heads (embed_multi=1)"
    assert D % E == 0, "input_dim must be divisible by embed_dim"
    S = D // E
    hid = p["w1"].shape[0]
    eps = 1e-5
    head_dim = E // num_heads                      # == 1
    q_scale = float(head_dim) ** -0.5

    # ---- lane packing: fold `pack` batch rows into the lane axis (128-lane dense I/O) ----
    pack = max(1, 128 // D)
    while pack > 1 and B % pack:
        pack -= 1
    rows = B // pack
    Dp = pack * D
    be = pack * E                                  # lanes per token block
    nblk = S * pack                                # number of E-wide diagonal blocks per packed row

    # packed x: row r, lane (t*pack*E + c*E + e) = x[r*pack + c, t*E + e]
    xp = x.reshape(rows, pack, S, E).transpose(0, 2, 1, 3).reshape(rows, Dp)

    # ---- host-side parameter prep (block-diagonal / packed layouts, built once) ----
    wq, wk, wv = jnp.split(p["in_proj_w"], 3, axis=0)
    bq, bk, bv = jnp.split(p["in_proj_b"], 3, axis=0)
    eye_blk = jnp.eye(nblk, dtype=jnp.float32)
    wqkv_bd = jnp.concatenate([jnp.kron(eye_blk, wq.T * q_scale),
                               jnp.kron(eye_blk, wk.T),
                               jnp.kron(eye_blk, wv.T)], axis=1)            # (Dp, 3Dp)
    bqkv_bd = jnp.concatenate([jnp.tile(bq * q_scale, nblk),
                               jnp.tile(bk, nblk),
                               jnp.tile(bv, nblk)]).reshape(1, 3 * Dp)
    wo_bd = jnp.kron(eye_blk, p["out_proj_w"].T)                            # (Dp, Dp)
    bo_bd = jnp.tile(p["out_proj_b"], nblk).reshape(1, Dp)

    eye_p = jnp.eye(pack, dtype=jnp.float32)
    w1_pk = (p["w1"].T.reshape(S, 1, E, 1, hid)
             * eye_p.reshape(1, pack, 1, pack, 1)).reshape(Dp, pack * hid)  # (Dp, P*hid)
    b1_pk = jnp.tile(p["b1"], pack).reshape(1, pack * hid)
    w2_pk = (eye_p.reshape(pack, 1, 1, pack, 1)
             * p["w2"].T.reshape(1, hid, S, 1, E)).reshape(pack * hid, Dp)  # (P*hid, Dp)

    def pack_feat(a):                              # (D,) per-feature vector -> packed (1, Dp)
        return jnp.broadcast_to(a.reshape(S, 1, E), (S, pack, E)).reshape(1, Dp)

    b2_pk = pack_feat(p["b2"])

    def bn_fold(g, b, m, v):                       # eval-mode BatchNorm1d -> scale/shift
        scale = g * jax.lax.rsqrt(v + eps)
        return pack_feat(scale), pack_feat(b - m * scale)

    scale1, shift1 = bn_fold(p["bn1_g"], p["bn1_b"], p["bn1_m"], p["bn1_v"])
    scale2, shift2 = bn_fold(p["bn2_g"], p["bn2_b"], p["bn2_m"], p["bn2_v"])

    # Matmul weights in param_dtype (bf16 recommended on v6e/v7x); elementwise params stay f32.
    mm = lambda w: w.astype(param_dtype)
    args = (xp, mm(wqkv_bd), bqkv_bd, mm(wo_bd), bo_bd,
            mm(w1_pk), b1_pk, mm(w2_pk), b2_pk, scale1, shift1, scale2, shift2)

    tb = _pick_block_rows(rows, block_rows)
    grid = (rows // tb,)

    in_specs = [pl.BlockSpec((tb, Dp), lambda i: (i, 0))]
    in_specs += [pl.BlockSpec(a.shape, lambda i: (0, 0)) for a in args[1:]]

    kernel = functools.partial(transformer_block_kernel, seq_len=S, block_lanes=be)
    out_p = pl.pallas_call(
        kernel,
        out_shape=jax.ShapeDtypeStruct((rows, Dp), x.dtype),
        grid_spec=pltpu.PrefetchScalarGridSpec(
            num_scalar_prefetch=0,
            grid=grid,
            in_specs=in_specs,
            out_specs=pl.BlockSpec((tb, Dp), lambda i: (i, 0)),
        ),
        compiler_params=pltpu.CompilerParams(
            dimension_semantics=("parallel",),     # independent batch tiles (both TCs on v7x)
            vmem_limit_bytes=16 * 1024 * 1024,
        ),
    )(*args)

    # unpack lanes back to (B, D)
    return out_p.reshape(rows, S, pack, E).transpose(0, 2, 1, 3).reshape(B, D)


def transformer_block_ref(x, p, *, num_heads):
    """Pure-JAX reference mirroring the PyTorch eval-mode forward."""
    B, D = x.shape
    E = p["out_proj_w"].shape[0]
    S = D // E
    H = num_heads
    hd = E // H
    wq, wk, wv = jnp.split(p["in_proj_w"], 3, axis=0)
    bq, bk, bv = jnp.split(p["in_proj_b"], 3, axis=0)
    xe = x.reshape(B * S, E)
    q = (xe @ wq.T + bq).reshape(B, S, H, hd).transpose(0, 2, 1, 3) * (hd ** -0.5)
    k = (xe @ wk.T + bk).reshape(B, S, H, hd).transpose(0, 2, 1, 3)
    v = (xe @ wv.T + bv).reshape(B, S, H, hd).transpose(0, 2, 1, 3)
    attn = jax.nn.softmax(jnp.einsum("bhqd,bhkd->bhqk", q, k), axis=-1)
    o = jnp.einsum("bhqk,bhkd->bhqd", attn, v).transpose(0, 2, 1, 3).reshape(B * S, E)
    attn_out = (o @ p["out_proj_w"].T + p["out_proj_b"]).reshape(B, D)

    def bn(y, g, b, m, var):
        return (y - m) * jax.lax.rsqrt(var + 1e-5) * g + b

    y1 = bn(attn_out + x, p["bn1_g"], p["bn1_b"], p["bn1_m"], p["bn1_v"])
    h = jax.nn.relu(y1 @ p["w1"].T + p["b1"])
    f = h @ p["w2"].T + p["b2"]
    return bn(f + y1, p["bn2_g"], p["bn2_b"], p["bn2_m"], p["bn2_v"])


if __name__ == "__main__":
    B, INPUT_DIM, HIDDEN_DIM, NUM_HEADS = 16, 64, 128, 8
    E = NUM_HEADS                      # embed_multi=1 -> embed_dim == num_heads, head_dim == 1
    f32 = jnp.float32
    ks = jax.random.split(jax.random.PRNGKey(0), 18)

    p = {
        "in_proj_w": jax.random.normal(ks[0], (3 * E, E), f32) * (E ** -0.5),
        "in_proj_b": jax.random.normal(ks[1], (3 * E,), f32) * 0.1,
        "out_proj_w": jax.random.normal(ks[2], (E, E), f32) * (E ** -0.5),
        "out_proj_b": jax.random.normal(ks[3], (E,), f32) * 0.1,
        "w1": jax.random.normal(ks[4], (HIDDEN_DIM, INPUT_DIM), f32) * (INPUT_DIM ** -0.5),
        "b1": jax.random.normal(ks[5], (HIDDEN_DIM,), f32) * 0.1,
        "w2": jax.random.normal(ks[6], (INPUT_DIM, HIDDEN_DIM), f32) * (HIDDEN_DIM ** -0.5),
        "b2": jax.random.normal(ks[7], (INPUT_DIM,), f32) * 0.1,
        "bn1_g": 1.0 + 0.1 * jax.random.normal(ks[8], (INPUT_DIM,), f32),
        "bn1_b": 0.1 * jax.random.normal(ks[9], (INPUT_DIM,), f32),
        "bn1_m": 0.1 * jax.random.normal(ks[10], (INPUT_DIM,), f32),
        "bn1_v": jax.random.uniform(ks[11], (INPUT_DIM,), f32, 0.5, 1.5),
        "bn2_g": 1.0 + 0.1 * jax.random.normal(ks[12], (INPUT_DIM,), f32),
        "bn2_b": 0.1 * jax.random.normal(ks[13], (INPUT_DIM,), f32),
        "bn2_m": 0.1 * jax.random.normal(ks[14], (INPUT_DIM,), f32),
        "bn2_v": jax.random.uniform(ks[15], (INPUT_DIM,), f32, 0.5, 1.5),
    }
    x = jax.random.normal(ks[16], (B, INPUT_DIM), f32)

    out = transformer_block(x, p, num_heads=NUM_HEADS)
    out = jax.block_until_ready(out)
    expected = transformer_block_ref(x, p, num_heads=NUM_HEADS)

    assert out.shape == (B, INPUT_DIM)
    max_diff = float(jnp.max(jnp.abs(out - expected)))
    assert jnp.allclose(out, expected, atol=2e-2, rtol=2e-2), max_diff
    print("KERNEL_OK")
</pallas_src>

<mosaic_0001>
module attributes {stable_mosaic.version = 11 : i64} {
  func.func @transformer_block_kernel(%arg0: i32, %arg1: memref<8x128xf32, #tpu.memory_space<vmem>>, %arg2: memref<128x384xf32, #tpu.memory_space<vmem>>, %arg3: memref<1x384xf32, #tpu.memory_space<vmem>>, %arg4: memref<128x128xf32, #tpu.memory_space<vmem>>, %arg5: memref<1x128xf32, #tpu.memory_space<vmem>>, %arg6: memref<128x256xf32, #tpu.memory_space<vmem>>, %arg7: memref<1x256xf32, #tpu.memory_space<vmem>>, %arg8: memref<256x128xf32, #tpu.memory_space<vmem>>, %arg9: memref<1x128xf32, #tpu.memory_space<vmem>>, %arg10: memref<1x128xf32, #tpu.memory_space<vmem>>, %arg11: memref<1x128xf32, #tpu.memory_space<vmem>>, %arg12: memref<1x128xf32, #tpu.memory_space<vmem>>, %arg13: memref<1x128xf32, #tpu.memory_space<vmem>>, %arg14: memref<8x128xf32, #tpu.memory_space<vmem>>) attributes {dimension_semantics = [#tpu.dimension_semantics<parallel>], iteration_bounds = array<i64: 1>, scalar_prefetch = 0 : i64, scratch_operands = 0 : i64, tpu.core_type = #tpu.core_type<tc>, window_params = [{transform_indices = @transform_0, window_bounds = array<i64: 8, 128>}, {pipeline_mode = #tpu.pipeline_mode<synchronous>, transform_indices = @transform_1, window_bounds = array<i64: 128, 384>}, {pipeline_mode = #tpu.pipeline_mode<synchronous>, transform_indices = @transform_2, window_bounds = array<i64: 1, 384>}, {pipeline_mode = #tpu.pipeline_mode<synchronous>, transform_indices = @transform_3, window_bounds = array<i64: 128, 128>}, {pipeline_mode = #tpu.pipeline_mode<synchronous>, transform_indices = @transform_4, window_bounds = array<i64: 1, 128>}, {pipeline_mode = #tpu.pipeline_mode<synchronous>, transform_indices = @transform_5, window_bounds = array<i64: 128, 256>}, {pipeline_mode = #tpu.pipeline_mode<synchronous>, transform_indices = @transform_6, window_bounds = array<i64: 1, 256>}, {pipeline_mode = #tpu.pipeline_mode<synchronous>, transform_indices = @transform_7, window_bounds = array<i64: 256, 128>}, {pipeline_mode = #tpu.pipeline_mode<synchronous>, transform_indices = @transform_8, window_bounds = array<i64: 1, 128>}, {pipeline_mode = #tpu.pipeline_mode<synchronous>, transform_indices = @transform_9, window_bounds = array<i64: 1, 128>}, {pipeline_mode = #tpu.pipeline_mode<synchronous>, transform_indices = @transform_10, window_bounds = array<i64: 1, 128>}, {pipeline_mode = #tpu.pipeline_mode<synchronous>, transform_indices = @transform_11, window_bounds = array<i64: 1, 128>}, {pipeline_mode = #tpu.pipeline_mode<synchronous>, transform_indices = @transform_12, window_bounds = array<i64: 1, 128>}, {transform_indices = @transform_13, window_bounds = array<i64: 8, 128>}]} {
    %c0 = arith.constant 0 : index
    %c0_0 = arith.constant 0 : index
    %0 = vector.load %arg1[%c0, %c0_0] : memref<8x128xf32, #tpu.memory_space<vmem>>, vector<8x128xf32>
    %c0_1 = arith.constant 0 : index
    %c0_2 = arith.constant 0 : index
    %1 = vector.load %arg2[%c0_1, %c0_2] : memref<128x384xf32, #tpu.memory_space<vmem>>, vector<128x384xf32>
    %cst = arith.constant dense<0.000000e+00> : vector<8x384xf32>
    %2 = tpu.matmul %0, %1, %cst {dimension_numbers = #tpu.dot_dimension_numbers<[1], [0], [0], [1], [0, 0, 1, 1], [], []>} : vector<8x128xf32>, vector<128x384xf32>, vector<8x384xf32> -> vector<8x384xf32>
    %c0_3 = arith.constant 0 : index
    %c0_4 = arith.constant 0 : index
    %3 = vector.load %arg3[%c0_3, %c0_4] : memref<1x384xf32, #tpu.memory_space<vmem>>, vector<1x384xf32>
    %4 = vector.broadcast %3 : vector<1x384xf32> to vector<8x384xf32>
    %5 = arith.addf %2, %4 : vector<8x384xf32>
    %6 = vector.extract_strided_slice %5 {offsets = [0, 0], sizes = [8, 128], strides = [1, 1]} : vector<8x384xf32> to vector<8x128xf32>
    %7 = vector.extract_strided_slice %5 {offsets = [0, 128], sizes = [8, 128], strides = [1, 1]} : vector<8x384xf32> to vector<8x128xf32>
    %8 = vector.extract_strided_slice %5 {offsets = [0, 256], sizes = [8, 128], strides = [1, 1]} : vector<8x384xf32> to vector<8x128xf32>
    %9 = arith.mulf %6, %7 : vector<8x128xf32>
    %c16_i32 = arith.constant 16 : i32
    %10 = tpu.dynamic_rotate %7 by %c16_i32 dim 1 : vector<8x128xf32>, i32 -> vector<8x128xf32>
    %11 = arith.mulf %6, %10 : vector<8x128xf32>
    %12 = arith.maximumf %9, %11 : vector<8x128xf32>
    %c32_i32 = arith.constant 32 : i32
    %13 = tpu.dynamic_rotate %7 by %c32_i32 dim 1 : vector<8x128xf32>, i32 -> vector<8x128xf32>
    %14 = arith.mulf %6, %13 : vector<8x128xf32>
    %15 = arith.maximumf %12, %14 : vector<8x128xf32>
    %c48_i32 = arith.constant 48 : i32
    %16 = tpu.dynamic_rotate %7 by %c48_i32 dim 1 : vector<8x128xf32>, i32 -> vector<8x128xf32>
    %17 = arith.mulf %6, %16 : vector<8x128xf32>
    %18 = arith.maximumf %15, %17 : vector<8x128xf32>
    %c64_i32 = arith.constant 64 : i32
    %19 = tpu.dynamic_rotate %7 by %c64_i32 dim 1 : vector<8x128xf32>, i32 -> vector<8x128xf32>
    %20 = arith.mulf %6, %19 : vector<8x128xf32>
    %21 = arith.maximumf %18, %20 : vector<8x128xf32>
    %c80_i32 = arith.constant 80 : i32
    %22 = tpu.dynamic_rotate %7 by %c80_i32 dim 1 : vector<8x128xf32>, i32 -> vector<8x128xf32>
    %23 = arith.mulf %6, %22 : vector<8x128xf32>
    %24 = arith.maximumf %21, %23 : vector<8x128xf32>
    %c96_i32 = arith.constant 96 : i32
    %25 = tpu.dynamic_rotate %7 by %c96_i32 dim 1 : vector<8x128xf32>, i32 -> vector<8x128xf32>
    %26 = arith.mulf %6, %25 : vector<8x128xf32>
    %27 = arith.maximumf %24, %26 : vector<8x128xf32>
    %c112_i32 = arith.constant 112 : i32
    %28 = tpu.dynamic_rotate %7 by %c112_i32 dim 1 : vector<8x128xf32>, i32 -> vector<8x128xf32>
    %29 = arith.mulf %6, %28 : vector<8x128xf32>
    %30 = arith.maximumf %27, %29 : vector<8x128xf32>
    %cst_5 = arith.constant 0.000000e+00 : f32
    %31 = vector.broadcast %cst_5 : f32 to vector<8x128xf32>
    %cst_6 = arith.constant 0.000000e+00 : f32
    %32 = vector.broadcast %cst_6 : f32 to vector<8x128xf32>
    %33 = arith.mulf %6, %7 : vector<8x128xf32>
    %34 = arith.subf %33, %30 : vector<8x128xf32>
    %35 = math.exp %34 : vector<8x128xf32>
    %36 = arith.addf %31, %35 : vector<8x128xf32>
    %37 = arith.mulf %35, %8 : vector<8x128xf32>
    %38 = arith.addf %32, %37 : vector<8x128xf32>
    %c16_i32_7 = arith.constant 16 : i32
    %39 = tpu.dynamic_rotate %7 by %c16_i32_7 dim 1 : vector<8x128xf32>, i32 -> vector<8x128xf32>
    %40 = arith.mulf %6, %39 : vector<8x128xf32>
    %41 = arith.subf %40, %30 : vector<8x128xf32>
    %42 = math.exp %41 : vector<8x128xf32>
    %43 = arith.addf %36, %42 : vector<8x128xf32>
    %c16_i32_8 = arith.constant 16 : i32
    %44 = tpu.dynamic_rotate %8 by %c16_i32_8 dim 1 : vector<8x128xf32>, i32 -> vector<8x128xf32>
    %45 = arith.mulf %42, %44 : vector<8x128xf32>
    %46 = arith.addf %38, %45 : vector<8x128xf32>
    %c32_i32_9 = arith.constant 32 : i32
    %47 = tpu.dynamic_rotate %7 by %c32_i32_9 dim 1 : vector<8x128xf32>, i32 -> vector<8x128xf32>
    %48 = arith.mulf %6, %47 : vector<8x128xf32>
    %49 = arith.subf %48, %30 : vector<8x128xf32>
    %50 = math.exp %49 : vector<8x128xf32>
    %51 = arith.addf %43, %50 : vector<8x128xf32>
    %c32_i32_10 = arith.constant 32 : i32
    %52 = tpu.dynamic_rotate %8 by %c32_i32_10 dim 1 : vector<8x128xf32>, i32 -> vector<8x128xf32>
    %53 = arith.mulf %50, %52 : vector<8x128xf32>
    %54 = arith.addf %46, %53 : vector<8x128xf32>
    %c48_i32_11 = arith.constant 48 : i32
    %55 = tpu.dynamic_rotate %7 by %c48_i32_11 dim 1 : vector<8x128xf32>, i32 -> vector<8x128xf32>
    %56 = arith.mulf %6, %55 : vector<8x128xf32>
    %57 = arith.subf %56, %30 : vector<8x128xf32>
    %58 = math.exp %57 : vector<8x128xf32>
    %59 = arith.addf %51, %58 : vector<8x128xf32>
    %c48_i32_12 = arith.constant 48 : i32
    %60 = tpu.dynamic_rotate %8 by %c48_i32_12 dim 1 : vector<8x128xf32>, i32 -> vector<8x128xf32>
    %61 = arith.mulf %58, %60 : vector<8x128xf32>
    %62 = arith.addf %54, %61 : vector<8x128xf32>
    %c64_i32_13 = arith.constant 64 : i32
    %63 = tpu.dynamic_rotate %7 by %c64_i32_13 dim 1 : vector<8x128xf32>, i32 -> vector<8x128xf32>
    %64 = arith.mulf %6, %63 : vector<8x128xf32>
    %65 = arith.subf %64, %30 : vector<8x128xf32>
    %66 = math.exp %65 : vector<8x128xf32>
    %67 = arith.addf %59, %66 : vector<8x128xf32>
    %c64_i32_14 = arith.constant 64 : i32
    %68 = tpu.dynamic_rotate %8 by %c64_i32_14 dim 1 : vector<8x128xf32>, i32 -> vector<8x128xf32>
    %69 = arith.mulf %66, %68 : vector<8x128xf32>
    %70 = arith.addf %62, %69 : vector<8x128xf32>
    %c80_i32_15 = arith.constant 80 : i32
    %71 = tpu.dynamic_rotate %7 by %c80_i32_15 dim 1 : vector<8x128xf32>, i32 -> vector<8x128xf32>
    %72 = arith.mulf %6, %71 : vector<8x128xf32>
    %73 = arith.subf %72, %30 : vector<8x128xf32>
    %74 = math.exp %73 : vector<8x128xf32>
    %75 = arith.addf %67, %74 : vector<8x128xf32>
    %c80_i32_16 = arith.constant 80 : i32
    %76 = tpu.dynamic_rotate %8 by %c80_i32_16 dim 1 : vector<8x128xf32>, i32 -> vector<8x128xf32>
    %77 = arith.mulf %74, %76 : vector<8x128xf32>
    %78 = arith.addf %70, %77 : vector<8x128xf32>
    %c96_i32_17 = arith.constant 96 : i32
    %79 = tpu.dynamic_rotate %7 by %c96_i32_17 dim 1 : vector<8x128xf32>, i32 -> vector<8x128xf32>
    %80 = arith.mulf %6, %79 : vector<8x128xf32>
    %81 = arith.subf %80, %30 : vector<8x128xf32>
    %82 = math.exp %81 : vector<8x128xf32>
    %83 = arith.addf %75, %82 : vector<8x128xf32>
    %c96_i32_18 = arith.constant 96 : i32
    %84 = tpu.dynamic_rotate %8 by %c96_i32_18 dim 1 : vector<8x128xf32>, i32 -> vector<8x128xf32>
    %85 = arith.mulf %82, %84 : vector<8x128xf32>
    %86 = arith.addf %78, %85 : vector<8x128xf32>
    %c112_i32_19 = arith.constant 112 : i32
    %87 = tpu.dynamic_rotate %7 by %c112_i32_19 dim 1 : vector<8x128xf32>, i32 -> vector<8x128xf32>
    %88 = arith.mulf %6, %87 : vector<8x128xf32>
    %89 = arith.subf %88, %30 : vector<8x128xf32>
    %90 = math.exp %89 : vector<8x128xf32>
    %91 = arith.addf %83, %90 : vector<8x128xf32>
    %c112_i32_20 = arith.constant 112 : i32
    %92 = tpu.dynamic_rotate %8 by %c112_i32_20 dim 1 : vector<8x128xf32>, i32 -> vector<8x128xf32>
    %93 = arith.mulf %90, %92 : vector<8x128xf32>
    %94 = arith.addf %86, %93 : vector<8x128xf32>
    %95 = tpu.reciprocal %91 {approx = true} : vector<8x128xf32> -> vector<8x128xf32>
    %96 = arith.mulf %94, %95 : vector<8x128xf32>
    %c0_21 = arith.constant 0 : index
    %c0_22 = arith.constant 0 : index
    %97 = vector.load %arg4[%c0_21, %c0_22] : memref<128x128xf32, #tpu.memory_space<vmem>>, vector<128x128xf32>
    %cst_23 = arith.constant dense<0.000000e+00> : vector<8x128xf32>
    %98 = tpu.matmul %96, %97, %cst_23 {dimension_numbers = #tpu.dot_dimension_numbers<[1], [0], [0], [1], [0, 0, 1, 1], [], []>} : vector<8x128xf32>, vector<128x128xf32>, vector<8x128xf32> -> vector<8x128xf32>
    %c0_24 = arith.constant 0 : index
    %c0_25 = arith.constant 0 : index
    %99 = vector.load %arg5[%c0_24, %c0_25] : memref<1x128xf32, #tpu.memory_space<vmem>>, vector<1x128xf32>
    %100 = vector.broadcast %99 : vector<1x128xf32> to vector<8x128xf32>
    %101 = arith.addf %98, %100 : vector<8x128xf32>
    %102 = arith.addf %101, %0 : vector<8x128xf32>
    %c0_26 = arith.constant 0 : index
    %c0_27 = arith.constant 0 : index
    %103 = vector.load %arg10[%c0_26, %c0_27] : memref<1x128xf32, #tpu.memory_space<vmem>>, vector<1x128xf32>
    %104 = vector.broadcast %103 : vector<1x128xf32> to vector<8x128xf32>
    %105 = arith.mulf %102, %104 : vector<8x128xf32>
    %c0_28 = arith.constant 0 : index
    %c0_29 = arith.constant 0 : index
    %106 = vector.load %arg11[%c0_28, %c0_29] : memref<1x128xf32, #tpu.memory_space<vmem>>, vector<1x128xf32>
    %107 = vector.broadcast %106 : vector<1x128xf32> to vector<8x128xf32>
    %108 = arith.addf %105, %107 : vector<8x128xf32>
    %c0_30 = arith.constant 0 : index
    %c0_31 = arith.constant 0 : index
    %109 = vector.load %arg6[%c0_30, %c0_31] : memref<128x256xf32, #tpu.memory_space<vmem>>, vector<128x256xf32>
    %cst_32 = arith.constant dense<0.000000e+00> : vector<8x256xf32>
    %110 = tpu.matmul %108, %109, %cst_32 {dimension_numbers = #tpu.dot_dimension_numbers<[1], [0], [0], [1], [0, 0, 1, 1], [], []>} : vector<8x128xf32>, vector<128x256xf32>, vector<8x256xf32> -> vector<8x256xf32>
    %c0_33 = arith.constant 0 : index
    %c0_34 = arith.constant 0 : index
    %111 = vector.load %arg7[%c0_33, %c0_34] : memref<1x256xf32, #tpu.memory_space<vmem>>, vector<1x256xf32>
    %112 = vector.broadcast %111 : vector<1x256xf32> to vector<8x256xf32>
    %113 = arith.addf %110, %112 : vector<8x256xf32>
    %cst_35 = arith.constant 0.000000e+00 : f32
    %114 = vector.broadcast %cst_35 : f32 to vector<8x256xf32>
    %115 = arith.maximumf %113, %114 : vector<8x256xf32>
    %c0_36 = arith.constant 0 : index
    %c0_37 = arith.constant 0 : index
    %116 = vector.load %arg8[%c0_36, %c0_37] : memref<256x128xf32, #tpu.memory_space<vmem>>, vector<256x128xf32>
    %cst_38 = arith.constant dense<0.000000e+00> : vector<8x128xf32>
    %117 = tpu.matmul %115, %116, %cst_38 {dimension_numbers = #tpu.dot_dimension_numbers<[1], [0], [0], [1], [0, 0, 1, 1], [], []>} : vector<8x256xf32>, vector<256x128xf32>, vector<8x128xf32> -> vector<8x128xf32>
    %c0_39 = arith.constant 0 : index
    %c0_40 = arith.constant 0 : index
    %118 = vector.load %arg9[%c0_39, %c0_40] : memref<1x128xf32, #tpu.memory_space<vmem>>, vector<1x128xf32>
    %119 = vector.broadcast %118 : vector<1x128xf32> to vector<8x128xf32>
    %120 = arith.addf %117, %119 : vector<8x128xf32>
    %121 = arith.addf %120, %108 : vector<8x128xf32>
    %c0_41 = arith.constant 0 : index
    %c0_42 = arith.constant 0 : index
    %122 = vector.load %arg12[%c0_41, %c0_42] : memref<1x128xf32, #tpu.memory_space<vmem>>, vector<1x128xf32>
    %123 = vector.broadcast %122 : vector<1x128xf32> to vector<8x128xf32>
    %124 = arith.mulf %121, %123 : vector<8x128xf32>
    %c0_43 = arith.constant 0 : index
    %c0_44 = arith.constant 0 : index
    %125 = vector.load %arg13[%c0_43, %c0_44] : memref<1x128xf32, #tpu.memory_space<vmem>>, vector<1x128xf32>
    %126 = vector.broadcast %125 : vector<1x128xf32> to vector<8x128xf32>
    %127 = arith.addf %124, %126 : vector<8x128xf32>
    %c0_45 = arith.constant 0 : index
    %c0_46 = arith.constant 0 : index
    %128 = vector.load %arg14[%c0_45, %c0_46] : memref<8x128xf32, #tpu.memory_space<vmem>>, vector<8x128xf32>
    tpu.vector_store %arg14[%c0_45, %c0_46], %127 {strides = array<i32>} : memref<8x128xf32, #tpu.memory_space<vmem>>, vector<8x128xf32>,
    return
  }
  func.func @transform_0(%arg0: i32) -> (i32, i32) {
    %c0_i32 = arith.constant 0 : i32
    %c0_i32_0 = arith.constant 0 : i32
    return %arg0, %c0_i32 : i32, i32
  }
  func.func @transform_1(%arg0: i32) -> (i32, i32) {
    %c0_i32 = arith.constant 0 : i32
    %c0_i32_0 = arith.constant 0 : i32
    %c0_i32_1 = arith.constant 0 : i32
    return %c0_i32, %c0_i32_0 : i32, i32
  }
  func.func @transform_2(%arg0: i32) -> (i32, i32) {
    %c0_i32 = arith.constant 0 : i32
    %c0_i32_0 = arith.constant 0 : i32
    %c0_i32_1 = arith.constant 0 : i32
    return %c0_i32, %c0_i32_0 : i32, i32
  }
  func.func @transform_3(%arg0: i32) -> (i32, i32) {
    %c0_i32 = arith.constant 0 : i32
    %c0_i32_0 = arith.constant 0 : i32
    %c0_i32_1 = arith.constant 0 : i32
    return %c0_i32, %c0_i32_0 : i32, i32
  }
  func.func @transform_4(%arg0: i32) -> (i32, i32) {
    %c0_i32 = arith.constant 0 : i32
    %c0_i32_0 = arith.constant 0 : i32
    %c0_i32_1 = arith.constant 0 : i32
    return %c0_i32, %c0_i32_0 : i32, i32
  }
  func.func @transform_5(%arg0: i32) -> (i32, i32) {
    %c0_i32 = arith.constant 0 : i32
    %c0_i32_0 = arith.constant 0 : i32
    %c0_i32_1 = arith.constant 0 : i32
    return %c0_i32, %c0_i32_0 : i32, i32
  }
  func.func @transform_6(%arg0: i32) -> (i32, i32) {
    %c0_i32 = arith.constant 0 : i32
    %c0_i32_0 = arith.constant 0 : i32
    %c0_i32_1 = arith.constant 0 : i32
    return %c0_i32, %c0_i32_0 : i32, i32
  }
  func.func @transform_7(%arg0: i32) -> (i32, i32) {
    %c0_i32 = arith.constant 0 : i32
    %c0_i32_0 = arith.constant 0 : i32
    %c0_i32_1 = arith.constant 0 : i32
    return %c0_i32, %c0_i32_0 : i32, i32
  }
  func.func @transform_8(%arg0: i32) -> (i32, i32) {
    %c0_i32 = arith.constant 0 : i32
    %c0_i32_0 = arith.constant 0 : i32
    %c0_i32_1 = arith.constant 0 : i32
    return %c0_i32, %c0_i32_0 : i32, i32
  }
  func.func @transform_9(%arg0: i32) -> (i32, i32) {
    %c0_i32 = arith.constant 0 : i32
    %c0_i32_0 = arith.constant 0 : i32
    %c0_i32_1 = arith.constant 0 : i32
    return %c0_i32, %c0_i32_0 : i32, i32
  }
  func.func @transform_10(%arg0: i32) -> (i32, i32) {
    %c0_i32 = arith.constant 0 : i32
    %c0_i32_0 = arith.constant 0 : i32
    %c0_i32_1 = arith.constant 0 : i32
    return %c0_i32, %c0_i32_0 : i32, i32
  }
  func.func @transform_11(%arg0: i32) -> (i32, i32) {
    %c0_i32 = arith.constant 0 : i32
    %c0_i32_0 = arith.constant 0 : i32
    %c0_i32_1 = arith.constant 0 : i32
    return %c0_i32, %c0_i32_0 : i32, i32
  }
  func.func @transform_12(%arg0: i32) -> (i32, i32) {
    %c0_i32 = arith.constant 0 : i32
    %c0_i32_0 = arith.constant 0 : i32
    %c0_i32_1 = arith.constant 0 : i32
    return %c0_i32, %c0_i32_0 : i32, i32
  }
  func.func @transform_13(%arg0: i32) -> (i32, i32) {
    %c0_i32 = arith.constant 0 : i32
    %c0_i32_0 = arith.constant 0 : i32
    return %arg0, %c0_i32 : i32, i32
  }
}

</mosaic_0001>

<llo_original>
// kernel: tpu_custom_call.1
$region0: #{tpu_custom_call.1}
  #allocation0 [shape = 'u32[]', space=smem, size = 0x4, offset = 0x4, fixed_abs, tag = 'smem constant byte address 0x4 - core index']
  #allocation1 [shape = 'u32[144,128]{1,0:T(1,128)}', space=vmem, size = 0x12000, scoped, tag = 'internal scratch']
  %s0 = inlined_call_operand.hbm [shape: f32[8,128], index: 0, kind: input, shape index: {}]
  %s1 = inlined_call_operand.hbm [shape: f32[128,384], index: 1, kind: input, shape index: {}]
  %s2 = inlined_call_operand.vmem [shape: f32[1,384], index: 2, kind: input, shape index: {}]
  %s3 = inlined_call_operand.hbm [shape: f32[128,128], index: 3, kind: input, shape index: {}]
  %s4 = inlined_call_operand.vmem [shape: f32[1,128], index: 4, kind: input, shape index: {}]
  %s5 = inlined_call_operand.hbm [shape: f32[128,256], index: 5, kind: input, shape index: {}]
  %s6 = inlined_call_operand.vmem [shape: f32[1,256], index: 6, kind: input, shape index: {}]
  %s7 = inlined_call_operand.hbm [shape: f32[256,128], index: 7, kind: input, shape index: {}]
  %s8 = inlined_call_operand.vmem [shape: f32[1,128], index: 8, kind: input, shape index: {}]
  %s9 = inlined_call_operand.vmem [shape: f32[1,128], index: 9, kind: input, shape index: {}]
  %s10 = inlined_call_operand.vmem [shape: f32[1,128], index: 10, kind: input, shape index: {}]
  %s11 = inlined_call_operand.vmem [shape: f32[1,128], index: 11, kind: input, shape index: {}]
  %s12 = inlined_call_operand.vmem [shape: f32[1,128], index: 12, kind: input, shape index: {}]
  %s13 = inlined_call_operand.hbm [shape: f32[8,128], index: 13, kind: output, shape index: {}]
  %s14 = sld [smem:[#allocation0]]
  $region82: #{tpu_custom_call.1} parent=0
    _
  %s16 = ssub.s32 1, %s14
  %s17 = scalar_select 0, %s16, %s14
  $region1: #{tpu_custom_call.1} parent=0
    #allocation2 [shape = 'u8[4096]{0}', space=vmem, size = 0x1000, scoped, tag = 'input window, operand 0, single buffered']
    #allocation3 [shape = 's32[1]{0}', space=sflag, size = 0x4, scoped, tag = 'scoped memory for tpu_custom_call.1']
    #allocation4 [shape = 's32[1]{0}', space=sflag, size = 0x4, scoped, tag = 'scoped memory for tpu_custom_call.1']
    #allocation5 [shape = 'u8[196608]{0}', space=vmem, size = 0x30000, scoped, tag = 'input window, operand 1, single buffered']
    #allocation6 [shape = 's32[1]{0}', space=sflag, size = 0x4, scoped, tag = 'scoped memory for tpu_custom_call.1']
    #allocation7 [shape = 'u8[65536]{0}', space=vmem, size = 0x10000, scoped, tag = 'input window, operand 3, single buffered']
    #allocation8 [shape = 'u8[131072]{0}', space=vmem, size = 0x20000, scoped, tag = 'input window, operand 5, single buffered']
    #allocation9 [shape = 's32[1]{0}', space=sflag, size = 0x4, scoped, tag = 'scoped memory for tpu_custom_call.1']
    #allocation10 [shape = 'u8[131072]{0}', space=vmem, size = 0x20000, scoped, tag = 'input window, operand 7, single buffered']
    #allocation11 [shape = 'u8[4096]{0}', space=vmem, size = 0x1000, scoped, tag = 'output window, operand 0, single buffered']
    %18 = vsyncpa [#allocation3], 0
    %19 = vsyncpa [#allocation6], 0
    %20 = vsyncpa [#allocation9], 0
    %21 = vsyncpa [#allocation4], 0
    // Predicated region
    $region2: #{tpu_custom_call.1} parent=1 // pred_check
      _
    $region3: #{tpu_custom_call.1} parent=1 // pred_check_branch
      %23 = sbr.rel (0) target = $region5
    $region4: #{tpu_custom_call.1} parent=1 // pred_region
      %s25 = ssub.s32 128, 128
      %26 = vsyncadd [#allocation3], %s25
      %s28 = sshll.u32 [#allocation2], 4
      %s29 = int_to_ptr.vmem [resolvable:$true] %s28
      %31 = dma.hbm_to_vmem [thread:$0]  %s0, 128, %s29, [#allocation3]
    $region5: #{tpu_custom_call.1} parent=1 // pred_fallthru
      _
    // Predicated region
    $region6: #{tpu_custom_call.1} parent=1 // pred_check
      _
    $region7: #{tpu_custom_call.1} parent=1 // pred_check_branch
      %33 = sbr.rel (0) target = $region9
    $region8: #{tpu_custom_call.1} parent=1 // pred_region
      %s35 = ssub.s32 6144, 6144
      %36 = vsyncadd [#allocation6], %s35
      %s37 = sshll.u32 [#allocation5], 4
      %s38 = int_to_ptr.vmem [resolvable:$true] %s37
      %43 = dma.hbm_to_vmem [thread:$0]  %s1, 6144, %s38, [#allocation6], 384, 384, 24
    $region9: #{tpu_custom_call.1} parent=1 // pred_fallthru
      _
    // Predicated region
    $region10: #{tpu_custom_call.1} parent=1 // pred_check
      _
    $region11: #{tpu_custom_call.1} parent=1 // pred_check_branch
      %45 = sbr.rel (0) target = $region13
    $region12: #{tpu_custom_call.1} parent=1 // pred_region
      _
    $region13: #{tpu_custom_call.1} parent=1 // pred_fallthru
      _
    // Predicated region
    $region14: #{tpu_custom_call.1} parent=1 // pred_check
      _
    $region15: #{tpu_custom_call.1} parent=1 // pred_check_branch
      %47 = sbr.rel (0) target = $region17
    $region16: #{tpu_custom_call.1} parent=1 // pred_region
      %s49 = ssub.s32 2048, 2048
      %50 = vsyncadd [#allocation6], %s49
      %s51 = sshll.u32 [#allocation7], 4
      %s52 = int_to_ptr.vmem [resolvable:$true] %s51
      %57 = dma.hbm_to_vmem [thread:$0]  %s3, 2048, %s52, [#allocation6], 128, 128, 8
    $region17: #{tpu_custom_call.1} parent=1 // pred_fallthru
      _
    // Predicated region
    $region18: #{tpu_custom_call.1} parent=1 // pred_check
      _
    $region19: #{tpu_custom_call.1} parent=1 // pred_check_branch
      %59 = sbr.rel (0) target = $region21
    $region20: #{tpu_custom_call.1} parent=1 // pred_region
      _
    $region21: #{tpu_custom_call.1} parent=1 // pred_fallthru
      _
    // Predicated region
    $region22: #{tpu_custom_call.1} parent=1 // pred_check
      _
    $region23: #{tpu_custom_call.1} parent=1 // pred_check_branch
      %61 = sbr.rel (0) target = $region25
    $region24: #{tpu_custom_call.1} parent=1 // pred_region
      %s63 = ssub.s32 4096, 4096
      %64 = vsyncadd [#allocation9], %s63
      %s65 = sshll.u32 [#allocation8], 4
      %s66 = int_to_ptr.vmem [resolvable:$true] %s65
      %71 = dma.hbm_to_vmem [thread:$0]  %s5, 4096, %s66, [#allocation9], 256, 256, 16
    $region25: #{tpu_custom_call.1} parent=1 // pred_fallthru
      _
    // Predicated region
    $region26: #{tpu_custom_call.1} parent=1 // pred_check
      _
    $region27: #{tpu_custom_call.1} parent=1 // pred_check_branch
      %73 = sbr.rel (0) target = $region29
    $region28: #{tpu_custom_call.1} parent=1 // pred_region
      _
    $region29: #{tpu_custom_call.1} parent=1 // pred_fallthru
      _
    // Predicated region
    $region30: #{tpu_custom_call.1} parent=1 // pred_check
      _
    $region31: #{tpu_custom_call.1} parent=1 // pred_check_branch
      %75 = sbr.rel (0) target = $region33
    $region32: #{tpu_custom_call.1} parent=1 // pred_region
      %s77 = ssub.s32 4096, 4096
      %78 = vsyncadd [#allocation9], %s77
      %s79 = sshll.u32 [#allocation10], 4
      %s80 = int_to_ptr.vmem [resolvable:$true] %s79
      %85 = dma.hbm_to_vmem [thread:$0]  %s7, 4096, %s80, [#allocation9], 128, 128, 8
    $region33: #{tpu_custom_call.1} parent=1 // pred_fallthru
      _
    // Predicated region
    $region34: #{tpu_custom_call.1} parent=1 // pred_check
      _
    $region35: #{tpu_custom_call.1} parent=1 // pred_check_branch
      %87 = sbr.rel (0) target = $region37
    $region36: #{tpu_custom_call.1} parent=1 // pred_region
      _
    $region37: #{tpu_custom_call.1} parent=1 // pred_fallthru
      _
    // Predicated region
    $region38: #{tpu_custom_call.1} parent=1 // pred_check
      _
    $region39: #{tpu_custom_call.1} parent=1 // pred_check_branch
      %89 = sbr.rel (0) target = $region41
    $region40: #{tpu_custom_call.1} parent=1 // pred_region
      _
    $region41: #{tpu_custom_call.1} parent=1 // pred_fallthru
      _
    // Predicated region
    $region42: #{tpu_custom_call.1} parent=1 // pred_check
      _
    $region43: #{tpu_custom_call.1} parent=1 // pred_check_branch
      %91 = sbr.rel (0) target = $region45
    $region44: #{tpu_custom_call.1} parent=1 // pred_region
      _
    $region45: #{tpu_custom_call.1} parent=1 // pred_fallthru
      _
    // Predicated region
    $region46: #{tpu_custom_call.1} parent=1 // pred_check
      _
    $region47: #{tpu_custom_call.1} parent=1 // pred_check_branch
      %93 = sbr.rel (0) target = $region49
    $region48: #{tpu_custom_call.1} parent=1 // pred_region
      _
    $region49: #{tpu_custom_call.1} parent=1 // pred_fallthru
      _
    // Predicated region
    $region50: #{tpu_custom_call.1} parent=1 // pred_check
      _
    $region51: #{tpu_custom_call.1} parent=1 // pred_check_branch
      %95 = sbr.rel (0) target = $region53
    $region52: #{tpu_custom_call.1} parent=1 // pred_region
      _
    $region53: #{tpu_custom_call.1} parent=1 // pred_fallthru
      _
    // Predicated region
    $region54: #{tpu_custom_call.1} parent=1 // pred_check
      _
    $region55: #{tpu_custom_call.1} parent=1 // pred_check_branch
      %97 = sbr.rel (0) target = $region57
    $region56: #{tpu_custom_call.1} parent=1 // pred_region
      %98 = dma.done [#allocation3], 128
    $region57: #{tpu_custom_call.1} parent=1 // pred_fallthru
      _
    // Predicated region
    $region58: #{tpu_custom_call.1} parent=1 // pred_check
      _
    $region59: #{tpu_custom_call.1} parent=1 // pred_check_branch
      %100 = sbr.rel (0) target = $region61
    $region60: #{tpu_custom_call.1} parent=1 // pred_region
      %101 = dma.done [#allocation6], 6144
    $region61: #{tpu_custom_call.1} parent=1 // pred_fallthru
      _
    // Predicated region
    $region62: #{tpu_custom_call.1} parent=1 // pred_check
      _
    $region63: #{tpu_custom_call.1} parent=1 // pred_check_branch
      %103 = sbr.rel (0) target = $region65
    $region64: #{tpu_custom_call.1} parent=1 // pred_region
      %104 = dma.done [#allocation6], 2048
    $region65: #{tpu_custom_call.1} parent=1 // pred_fallthru
      _
    // Predicated region
    $region66: #{tpu_custom_call.1} parent=1 // pred_check
      _
    $region67: #{tpu_custom_call.1} parent=1 // pred_check_branch
      %106 = sbr.rel (0) target = $region69
    $region68: #{tpu_custom_call.1} parent=1 // pred_region
      %107 = dma.done [#allocation9], 4096
    $region69: #{tpu_custom_call.1} parent=1 // pred_fallthru
      _
    // Predicated region
    $region70: #{tpu_custom_call.1} parent=1 // pred_check
      _
    $region71: #{tpu_custom_call.1} parent=1 // pred_check_branch
      %109 = sbr.rel (0) target = $region73
    $region72: #{tpu_custom_call.1} parent=1 // pred_region
      %110 = dma.done [#allocation9], 4096
    $region73: #{tpu_custom_call.1} parent=1 // pred_fallthru
      _
    %v111 = vld [vmem:[#allocation2] sm:$0xff]
    %v112 = vld [vmem:[#allocation5] sm:$0xff]
    %v113 = vld [vmem:[#allocation5 + $0x8] sm:$0xff]
    %v114 = vld [vmem:[#allocation5 + $0x10] sm:$0xff]
    %v115 = vld [vmem:[#allocation5 + $0x18] sm:$0xff]
    %v116 = vld [vmem:[#allocation5 + $0x20] sm:$0xff]
    %v117 = vld [vmem:[#allocation5 + $0x28] sm:$0xff]
    %v118 = vld [vmem:[#allocation5 + $0x30] sm:$0xff]
    %v119 = vld [vmem:[#allocation5 + $0x38] sm:$0xff]
    %v120 = vld [vmem:[#allocation5 + $0x40] sm:$0xff]
    %v121 = vld [vmem:[#allocation5 + $0x48] sm:$0xff]
    %v122 = vld [vmem:[#allocation5 + $0x50] sm:$0xff]
    %v123 = vld [vmem:[#allocation5 + $0x58] sm:$0xff]
    %v124 = vld [vmem:[#allocation5 + $0x60] sm:$0xff]
    %v125 = vld [vmem:[#allocation5 + $0x68] sm:$0xff]
    %v126 = vld [vmem:[#allocation5 + $0x70] sm:$0xff]
    %v127 = vld [vmem:[#allocation5 + $0x78] sm:$0xff]
    %v128 = vld [vmem:[#allocation5 + $0x80] sm:$0xff]
    %v129 = vld [vmem:[#allocation5 + $0x88] sm:$0xff]
    %v130 = vld [vmem:[#allocation5 + $0x90] sm:$0xff]
    %v131 = vld [vmem:[#allocation5 + $0x98] sm:$0xff]
    %v132 = vld [vmem:[#allocation5 + $0xa0] sm:$0xff]
    %v133 = vld [vmem:[#allocation5 + $0xa8] sm:$0xff]
    %v134 = vld [vmem:[#allocation5 + $0xb0] sm:$0xff]
    %v135 = vld [vmem:[#allocation5 + $0xb8] sm:$0xff]
    %v136 = vld [vmem:[#allocation5 + $0xc0] sm:$0xff]
    %v137 = vld [vmem:[#allocation5 + $0xc8] sm:$0xff]
    %v138 = vld [vmem:[#allocation5 + $0xd0] sm:$0xff]
    %v139 = vld [vmem:[#allocation5 + $0xd8] sm:$0xff]
    %v140 = vld [vmem:[#allocation5 + $0xe0] sm:$0xff]
    %v141 = vld [vmem:[#allocation5 + $0xe8] sm:$0xff]
    %v142 = vld [vmem:[#allocation5 + $0xf0] sm:$0xff]
    %v143 = vld [vmem:[#allocation5 + $0xf8] sm:$0xff]
    %v144 = vld [vmem:[#allocation5 + $0x100] sm:$0xff]
    %v145 = vld [vmem:[#allocation5 + $0x108] sm:$0xff]
    %v146 = vld [vmem:[#allocation5 + $0x110] sm:$0xff]
    %v147 = vld [vmem:[#allocation5 + $0x118] sm:$0xff]
    %v148 = vld [vmem:[#allocation5 + $0x120] sm:$0xff]
    %v149 = vld [vmem:[#allocation5 + $0x128] sm:$0xff]
    %v150 = vld [vmem:[#allocation5 + $0x130] sm:$0xff]
    %v151 = vld [vmem:[#allocation5 + $0x138] sm:$0xff]
    %v152 = vld [vmem:[#allocation5 + $0x140] sm:$0xff]
    %v153 = vld [vmem:[#allocation5 + $0x148] sm:$0xff]
    %v154 = vld [vmem:[#allocation5 + $0x150] sm:$0xff]
    %v155 = vld [vmem:[#allocation5 + $0x158] sm:$0xff]
    %v156 = vld [vmem:[#allocation5 + $0x160] sm:$0xff]
    %v157 = vld [vmem:[#allocation5 + $0x168] sm:$0xff]
    %v158 = vld [vmem:[#allocation5 + $0x170] sm:$0xff]
    %v159 = vld [vmem:[#allocation5 + $0x178] sm:$0xff]
    %v160 = vld [vmem:[%s2] sm:$0x7]
    %v162 = vlaneseq
    %v163 = vshrl.u32 %v162, 7
    %v164 = vsub.s32 0, %v163
    %v165 = vrot.slane %v160, %v164
    %v166 = vlaneseq
    %v167 = vshrl.u32 %v166, 7
    %v168 = vsub.s32 1, %v167
    %v169 = vrot.slane %v160, %v168
    %v170 = vlaneseq
    %v171 = vshrl.u32 %v170, 7
    %v172 = vsub.s32 2, %v171
    %v173 = vrot.slane %v160, %v172
    %177 = vmatprep.subr.mxu0 %v113
    %178 = vmatpush1.msra.mxu0 %v112
    %179 = vmatprep.subr.mxu0 %v116
    %180 = vmatpush1.msra.mxu0 %v115
    %181 = vmatprep.subr.mxu0 %v119
    %182 = vmatpush1.msra.mxu0 %v118
    %183 = vmatprep.subr.mxu0 %v122
    %184 = vmatpush1.msra.mxu0 %v121
    %185 = vmatprep.subr.mxu0 %v125
    %186 = vmatpush1.msra.mxu0 %v124
    %187 = vmatprep.subr.mxu0 %v128
    %188 = vmatpush1.msra.mxu0 %v127
    %189 = vmatprep.subr.mxu0 %v131
    %190 = vmatpush1.msra.mxu0 %v130
    %191 = vmatprep.subr.mxu0 %v134
    %192 = vmatpush1.msra.mxu0 %v133
    %193 = vmatprep.subr.mxu0 %v137
    %194 = vmatpush1.msra.mxu0 %v136
    %195 = vmatprep.subr.mxu0 %v140
    %196 = vmatpush1.msra.mxu0 %v139
    %197 = vmatprep.subr.mxu0 %v143
    %198 = vmatpush1.msra.mxu0 %v142
    %199 = vmatprep.subr.mxu0 %v146
    %200 = vmatpush1.msra.mxu0 %v145
    %201 = vmatprep.subr.mxu0 %v149
    %202 = vmatpush1.msra.mxu0 %v148
    %203 = vmatprep.subr.mxu0 %v152
    %204 = vmatpush1.msra.mxu0 %v151
    %205 = vmatprep.subr.mxu0 %v155
    %206 = vmatpush1.msra.mxu0 %v154
    %207 = vmatprep.subr.mxu0 %v158
    %208 = vmatpush1.msra.mxu0 %v157
    %209 = vmatprep.subr.mxu0 0.0
    %210 = vmatpush1.msra.mxu0 0.0
    %211 = vmatprep.subr.mxu0 0.0
    %212 = vmatpush1.msra.mxu0 0.0
    %213 = vmatprep.subr.mxu0 0.0
    %214 = vmatpush1.msra.mxu0 0.0
    %215 = vmatprep.subr.mxu0 0.0
    %216 = vmatpush1.msra.mxu0 0.0
    %217 = vmatprep.subr.mxu0 0.0
    %218 = vmatpush1.msra.mxu0 0.0
    %219 = vmatprep.subr.mxu0 0.0
    %220 = vmatpush1.msra.mxu0 0.0
    %221 = vmatprep.subr.mxu0 0.0
    %222 = vmatpush1.msra.mxu0 0.0
    %223 = vmatprep.subr.mxu0 0.0
    %224 = vmatpush1.msra.mxu0 0.0
    %225 = vmatprep.subr.mxu0 0.0
    %226 = vmatpush1.msra.mxu0 0.0
    %227 = vmatprep.subr.mxu0 0.0
    %228 = vmatpush1.msra.mxu0 0.0
    %229 = vmatprep.subr.mxu0 0.0
    %230 = vmatpush1.msra.mxu0 0.0
    %231 = vmatprep.subr.mxu0 0.0
    %232 = vmatpush1.msra.mxu0 0.0
    %233 = vmatprep.subr.mxu0 0.0
    %234 = vmatpush1.msra.mxu0 0.0
    %235 = vmatprep.subr.mxu0 0.0
    %236 = vmatpush1.msra.mxu0 0.0
    %237 = vmatprep.subr.mxu0 0.0
    %238 = vmatpush1.msra.mxu0 0.0
    %239 = vmatprep.subr.mxu0 0.0
    %240 = vmatpush1.msra.mxu0 0.0
    %241 = vmatprep.mubr.f32.mxu0 0.0
    %242 = vmatmul.mubr.f32.gmra.mrb[0].mxu0 %v111
    %v243 = vpop.f32.mrb[0].mxu0
    %v244 = vadd.f32 %v165, %v243
    %v245 = vpop.f32.mrb[0].mxu0
    %v246 = vadd.f32 %v169, %v245
    %247 = vdwg.mxu0
    %248 = vmatprep.subr.mxu0 0.0
    %249 = vmatpush1.msra.mxu0 %v114
    %250 = vmatprep.subr.mxu0 0.0
    %251 = vmatpush1.msra.mxu0 %v117
    %252 = vmatprep.subr.mxu0 0.0
    %253 = vmatpush1.msra.mxu0 %v120
    %254 = vmatprep.subr.mxu0 0.0
    %255 = vmatpush1.msra.mxu0 %v123
    %256 = vmatprep.subr.mxu0 0.0
    %257 = vmatpush1.msra.mxu0 %v126
    %258 = vmatprep.subr.mxu0 0.0
    %259 = vmatpush1.msra.mxu0 %v129
    %260 = vmatprep.subr.mxu0 0.0
    %261 = vmatpush1.msra.mxu0 %v132
    %262 = vmatprep.subr.mxu0 0.0
    %263 = vmatpush1.msra.mxu0 %v135
    %264 = vmatprep.subr.mxu0 0.0
    %265 = vmatpush1.msra.mxu0 %v138
    %266 = vmatprep.subr.mxu0 0.0
    %267 = vmatpush1.msra.mxu0 %v141
    %268 = vmatprep.subr.mxu0 0.0
    %269 = vmatpush1.msra.mxu0 %v144
    %270 = vmatprep.subr.mxu0 0.0
    %271 = vmatpush1.msra.mxu0 %v147
    %272 = vmatprep.subr.mxu0 0.0
    %273 = vmatpush1.msra.mxu0 %v150
    %274 = vmatprep.subr.mxu0 0.0
    %275 = vmatpush1.msra.mxu0 %v153
    %276 = vmatprep.subr.mxu0 0.0
    %277 = vmatpush1.msra.mxu0 %v156
    %278 = vmatprep.subr.mxu0 0.0
    %279 = vmatpush1.msra.mxu0 %v159
    %280 = vmatprep.subr.mxu0 0.0
    %281 = vmatpush1.msra.mxu0 0.0
    %282 = vmatprep.subr.mxu0 0.0
    %283 = vmatpush1.msra.mxu0 0.0
    %284 = vmatprep.subr.mxu0 0.0
    %285 = vmatpush1.msra.mxu0 0.0
    %286 = vmatprep.subr.mxu0 0.0
    %287 = vmatpush1.msra.mxu0 0.0
    %288 = vmatprep.subr.mxu0 0.0
    %289 = vmatpush1.msra.mxu0 0.0
    %290 = vmatprep.subr.mxu0 0.0
    %291 = vmatpush1.msra.mxu0 0.0
    %292 = vmatprep.subr.mxu0 0.0
    %293 = vmatpush1.msra.mxu0 0.0
    %294 = vmatprep.subr.mxu0 0.0
    %295 = vmatpush1.msra.mxu0 0.0
    %296 = vmatprep.subr.mxu0 0.0
    %297 = vmatpush1.msra.mxu0 0.0
    %298 = vmatprep.subr.mxu0 0.0
    %299 = vmatpush1.msra.mxu0 0.0
    %300 = vmatprep.subr.mxu0 0.0
    %301 = vmatpush1.msra.mxu0 0.0
    %302 = vmatprep.subr.mxu0 0.0
    %303 = vmatpush1.msra.mxu0 0.0
    %304 = vmatprep.subr.mxu0 0.0
    %305 = vmatpush1.msra.mxu0 0.0
    %306 = vmatprep.subr.mxu0 0.0
    %307 = vmatpush1.msra.mxu0 0.0
    %308 = vmatprep.subr.mxu0 0.0
    %309 = vmatpush1.msra.mxu0 0.0
    %310 = vmatprep.subr.mxu0 0.0
    %311 = vmatpush1.msra.mxu0 0.0
    %312 = vmatprep.mubr.f32.mxu0 0.0
    %313 = vmatmul.mubr.f32.gmra.mrb[0].mxu0 %v111
    %v314 = vpop.f32.mrb[0].mxu0
    %v315 = vadd.f32 %v173, %v314
    %v316 = vpop.f32.mrb[0].mxu0
    %317 = vdwg.mxu0
    %v318 = vmul.f32 %v244, %v246
    %319 = vrot.lane.b32.xlu0 %v246, 16
    %v320 = vpop.permute.xlu0 %319
    %v321 = vmul.f32 %v244, %v320
    %v322 = vmax.f32 %v318, %v321
    %323 = vrot.lane.b32.xlu0 %v246, 32
    %v324 = vpop.permute.xlu0 %323
    %v325 = vmul.f32 %v244, %v324
    %v326 = vmax.f32 %v322, %v325
    %327 = vrot.lane.b32.xlu0 %v246, 48
    %v328 = vpop.permute.xlu0 %327
    %v329 = vmul.f32 %v244, %v328
    %v330 = vmax.f32 %v326, %v329
    %331 = vrot.lane.b32.xlu0 %v246, 64
    %v332 = vpop.permute.xlu0 %331
    %v333 = vmul.f32 %v244, %v332
    %v334 = vmax.f32 %v330, %v333
    %335 = vrot.lane.b32.xlu0 %v246, 80
    %v336 = vpop.permute.xlu0 %335
    %v337 = vmul.f32 %v244, %v336
    %v338 = vmax.f32 %v334, %v337
    %339 = vrot.lane.b32.xlu0 %v246, 96
    %v340 = vpop.permute.xlu0 %339
    %v341 = vmul.f32 %v244, %v340
    %v342 = vmax.f32 %v338, %v341
    %343 = vrot.lane.b32.xlu0 %v246, 112
    %v344 = vpop.permute.xlu0 %343
    %v345 = vmul.f32 %v244, %v344
    %v346 = vmax.f32 %v342, %v345
    %v347 = vsub.f32 %v318, %v346
    %v348 = vmul.f32 %v347, 1.442695
    %v349 = vpow.pop %v348
    %v350 = vadd.f32 %v349, 0.0
    %v351 = vmul.f32 %v349, %v315
    %v352 = vadd.f32 %v351, 0.0
    %v353 = vsub.f32 %v321, %v346
    %v354 = vmul.f32 %v353, 1.442695
    %v355 = vpow.pop %v354
    %v356 = vadd.f32 %v350, %v355
    %357 = vrot.lane.b32.xlu0 %v315, 16
    %v358 = vpop.permute.xlu0 %357
    %v359 = vmul.f32 %v355, %v358
    %v360 = vadd.f32 %v352, %v359
    %v361 = vsub.f32 %v325, %v346
    %v362 = vmul.f32 %v361, 1.442695
    %v363 = vpow.pop %v362
    %v364 = vadd.f32 %v356, %v363
    %365 = vrot.lane.b32.xlu0 %v315, 32
    %v366 = vpop.permute.xlu0 %365
    %v367 = vmul.f32 %v363, %v366
    %v368 = vadd.f32 %v360, %v367
    %v369 = vsub.f32 %v329, %v346
    %v370 = vmul.f32 %v369, 1.442695
    %v371 = vpow.pop %v370
    %v372 = vadd.f32 %v364, %v371
    %373 = vrot.lane.b32.xlu0 %v315, 48
    %v374 = vpop.permute.xlu0 %373
    %v375 = vmul.f32 %v371, %v374
    %v376 = vadd.f32 %v368, %v375
    %v377 = vsub.f32 %v333, %v346
    %v378 = vmul.f32 %v377, 1.442695
    %v379 = vpow.pop %v378
    %v380 = vadd.f32 %v372, %v379
    %381 = vrot.lane.b32.xlu0 %v315, 64
    %v382 = vpop.permute.xlu0 %381
    %v383 = vmul.f32 %v379, %v382
    %v384 = vadd.f32 %v376, %v383
    %v385 = vsub.f32 %v337, %v346
    %v386 = vmul.f32 %v385, 1.442695
    %v387 = vpow.pop %v386
    %v388 = vadd.f32 %v380, %v387
    %389 = vrot.lane.b32.xlu0 %v315, 80
    %v390 = vpop.permute.xlu0 %389
    %v391 = vmul.f32 %v387, %v390
    %v392 = vadd.f32 %v384, %v391
    %v393 = vsub.f32 %v341, %v346
    %v394 = vmul.f32 %v393, 1.442695
    %v395 = vpow.pop %v394
    %v396 = vadd.f32 %v388, %v395
    %397 = vrot.lane.b32.xlu0 %v315, 96
    %v398 = vpop.permute.xlu0 %397
    %v399 = vmul.f32 %v395, %v398
    %v400 = vadd.f32 %v392, %v399
    %v401 = vsub.f32 %v345, %v346
    %v402 = vmul.f32 %v401, 1.442695
    %v403 = vpow.pop %v402
    %v404 = vadd.f32 %v396, %v403
    %405 = vrot.lane.b32.xlu0 %v315, 112
    %v406 = vpop.permute.xlu0 %405
    %v407 = vmul.f32 %v403, %v406
    %v408 = vadd.f32 %v400, %v407
    %v409 = vrcp.pop %v404
    %v410 = vmul.f32 %v408, %v409
    %v411 = vld [vmem:[#allocation7] sm:$0xff]
    %v412 = vld [vmem:[#allocation7 + $0x8] sm:$0xff]
    %v413 = vld [vmem:[#allocation7 + $0x10] sm:$0xff]
    %v414 = vld [vmem:[#allocation7 + $0x18] sm:$0xff]
    %v415 = vld [vmem:[#allocation7 + $0x20] sm:$0xff]
    %v416 = vld [vmem:[#allocation7 + $0x28] sm:$0xff]
    %v417 = vld [vmem:[#allocation7 + $0x30] sm:$0xff]
    %v418 = vld [vmem:[#allocation7 + $0x38] sm:$0xff]
    %v419 = vld [vmem:[#allocation7 + $0x40] sm:$0xff]
    %v420 = vld [vmem:[#allocation7 + $0x48] sm:$0xff]
    %v421 = vld [vmem:[#allocation7 + $0x50] sm:$0xff]
    %v422 = vld [vmem:[#allocation7 + $0x58] sm:$0xff]
    %v423 = vld [vmem:[#allocation7 + $0x60] sm:$0xff]
    %v424 = vld [vmem:[#allocation7 + $0x68] sm:$0xff]
    %v425 = vld [vmem:[#allocation7 + $0x70] sm:$0xff]
    %v426 = vld [vmem:[#allocation7 + $0x78] sm:$0xff]
    %v427 = vld [vmem:[%s4] sm:$0x1]
    %v429 = vlaneseq
    %v430 = vshrl.u32 %v429, 7
    %v431 = vsub.s32 0, %v430
    %v432 = vrot.slane %v427, %v431
    %434 = vmatprep.subr.mxu0 0.0
    %435 = vmatpush1.msra.mxu0 %v411
    %436 = vmatprep.subr.mxu0 0.0
    %437 = vmatpush1.msra.mxu0 %v412
    %438 = vmatprep.subr.mxu0 0.0
    %439 = vmatpush1.msra.mxu0 %v413
    %440 = vmatprep.subr.mxu0 0.0
    %441 = vmatpush1.msra.mxu0 %v414
    %442 = vmatprep.subr.mxu0 0.0
    %443 = vmatpush1.msra.mxu0 %v415
    %444 = vmatprep.subr.mxu0 0.0
    %445 = vmatpush1.msra.mxu0 %v416
    %446 = vmatprep.subr.mxu0 0.0
    %447 = vmatpush1.msra.mxu0 %v417
    %448 = vmatprep.subr.mxu0 0.0
    %449 = vmatpush1.msra.mxu0 %v418
    %450 = vmatprep.subr.mxu0 0.0
    %451 = vmatpush1.msra.mxu0 %v419
    %452 = vmatprep.subr.mxu0 0.0
    %453 = vmatpush1.msra.mxu0 %v420
    %454 = vmatprep.subr.mxu0 0.0
    %455 = vmatpush1.msra.mxu0 %v421
    %456 = vmatprep.subr.mxu0 0.0
    %457 = vmatpush1.msra.mxu0 %v422
    %458 = vmatprep.subr.mxu0 0.0
    %459 = vmatpush1.msra.mxu0 %v423
    %460 = vmatprep.subr.mxu0 0.0
    %461 = vmatpush1.msra.mxu0 %v424
    %462 = vmatprep.subr.mxu0 0.0
    %463 = vmatpush1.msra.mxu0 %v425
    %464 = vmatprep.subr.mxu0 0.0
    %465 = vmatpush1.msra.mxu0 %v426
    %466 = vmatprep.subr.mxu0 0.0
    %467 = vmatpush1.msra.mxu0 0.0
    %468 = vmatprep.subr.mxu0 0.0
    %469 = vmatpush1.msra.mxu0 0.0
    %470 = vmatprep.subr.mxu0 0.0
    %471 = vmatpush1.msra.mxu0 0.0
    %472 = vmatprep.subr.mxu0 0.0
    %473 = vmatpush1.msra.mxu0 0.0
    %474 = vmatprep.subr.mxu0 0.0
    %475 = vmatpush1.msra.mxu0 0.0
    %476 = vmatprep.subr.mxu0 0.0
    %477 = vmatpush1.msra.mxu0 0.0
    %478 = vmatprep.subr.mxu0 0.0
    %479 = vmatpush1.msra.mxu0 0.0
    %480 = vmatprep.subr.mxu0 0.0
    %481 = vmatpush1.msra.mxu0 0.0
    %482 = vmatprep.subr.mxu0 0.0
    %483 = vmatpush1.msra.mxu0 0.0
    %484 = vmatprep.subr.mxu0 0.0
    %485 = vmatpush1.msra.mxu0 0.0
    %486 = vmatprep.subr.mxu0 0.0
    %487 = vmatpush1.msra.mxu0 0.0
    %488 = vmatprep.subr.mxu0 0.0
    %489 = vmatpush1.msra.mxu0 0.0
    %490 = vmatprep.subr.mxu0 0.0
    %491 = vmatpush1.msra.mxu0 0.0
    %492 = vmatprep.subr.mxu0 0.0
    %493 = vmatpush1.msra.mxu0 0.0
    %494 = vmatprep.subr.mxu0 0.0
    %495 = vmatpush1.msra.mxu0 0.0
    %496 = vmatprep.subr.mxu0 0.0
    %497 = vmatpush1.msra.mxu0 0.0
    %498 = vmatprep.mubr.f32.mxu0 0.0
    %499 = vmatmul.mubr.f32.gmra.mrb[0].mxu0 %v410
    %v500 = vpop.f32.mrb[0].mxu0
    %v501 = vadd.f32 %v432, %v500
    %v502 = vpop.f32.mrb[0].mxu0
    %503 = vdwg.mxu0
    %v504 = vadd.f32 %v501, %v111
    %v505 = vld [vmem:[%s9] sm:$0x1]
    %v507 = vlaneseq
    %v508 = vshrl.u32 %v507, 7
    %v509 = vsub.s32 0, %v508
    %v510 = vrot.slane %v505, %v509
    %v512 = vmul.f32 %v504, %v510
    %v513 = vld [vmem:[%s10] sm:$0x1]
    %v515 = vlaneseq
    %v516 = vshrl.u32 %v515, 7
    %v517 = vsub.s32 0, %v516
    %v518 = vrot.slane %v513, %v517
    %v520 = vadd.f32 %v512, %v518
    %v521 = vld [vmem:[#allocation8] sm:$0xff]
    %v522 = vld [vmem:[#allocation8 + $0x8] sm:$0xff]
    %v523 = vld [vmem:[#allocation8 + $0x10] sm:$0xff]
    %v524 = vld [vmem:[#allocation8 + $0x18] sm:$0xff]
    %v525 = vld [vmem:[#allocation8 + $0x20] sm:$0xff]
    %v526 = vld [vmem:[#allocation8 + $0x28] sm:$0xff]
    %v527 = vld [vmem:[#allocation8 + $0x30] sm:$0xff]
    %v528 = vld [vmem:[#allocation8 + $0x38] sm:$0xff]
    %v529 = vld [vmem:[#allocation8 + $0x40] sm:$0xff]
    %v530 = vld [vmem:[#allocation8 + $0x48] sm:$0xff]
    %v531 = vld [vmem:[#allocation8 + $0x50] sm:$0xff]
    %v532 = vld [vmem:[#allocation8 + $0x58] sm:$0xff]
    %v533 = vld [vmem:[#allocation8 + $0x60] sm:$0xff]
    %v534 = vld [vmem:[#allocation8 + $0x68] sm:$0xff]
    %v535 = vld [vmem:[#allocation8 + $0x70] sm:$0xff]
    %v536 = vld [vmem:[#allocation8 + $0x78] sm:$0xff]
    %v537 = vld [vmem:[#allocation8 + $0x80] sm:$0xff]
    %v538 = vld [vmem:[#allocation8 + $0x88] sm:$0xff]
    %v539 = vld [vmem:[#allocation8 + $0x90] sm:$0xff]
    %v540 = vld [vmem:[#allocation8 + $0x98] sm:$0xff]
    %v541 = vld [vmem:[#allocation8 + $0xa0] sm:$0xff]
    %v542 = vld [vmem:[#allocation8 + $0xa8] sm:$0xff]
    %v543 = vld [vmem:[#allocation8 + $0xb0] sm:$0xff]
    %v544 = vld [vmem:[#allocation8 + $0xb8] sm:$0xff]
    %v545 = vld [vmem:[#allocation8 + $0xc0] sm:$0xff]
    %v546 = vld [vmem:[#allocation8 + $0xc8] sm:$0xff]
    %v547 = vld [vmem:[#allocation8 + $0xd0] sm:$0xff]
    %v548 = vld [vmem:[#allocation8 + $0xd8] sm:$0xff]
    %v549 = vld [vmem:[#allocation8 + $0xe0] sm:$0xff]
    %v550 = vld [vmem:[#allocation8 + $0xe8] sm:$0xff]
    %v551 = vld [vmem:[#allocation8 + $0xf0] sm:$0xff]
    %v552 = vld [vmem:[#allocation8 + $0xf8] sm:$0xff]
    %v553 = vld [vmem:[%s6] sm:$0x3]
    %v555 = vlaneseq
    %v556 = vshrl.u32 %v555, 7
    %v557 = vsub.s32 0, %v556
    %v558 = vrot.slane %v553, %v557
    %v559 = vlaneseq
    %v560 = vshrl.u32 %v559, 7
    %v561 = vsub.s32 1, %v560
    %v562 = vrot.slane %v553, %v561
    %565 = vmatprep.subr.mxu0 %v522
    %566 = vmatpush1.msra.mxu0 %v521
    %567 = vmatprep.subr.mxu0 %v524
    %568 = vmatpush1.msra.mxu0 %v523
    %569 = vmatprep.subr.mxu0 %v526
    %570 = vmatpush1.msra.mxu0 %v525
    %571 = vmatprep.subr.mxu0 %v528
    %572 = vmatpush1.msra.mxu0 %v527
    %573 = vmatprep.subr.mxu0 %v530
    %574 = vmatpush1.msra.mxu0 %v529
    %575 = vmatprep.subr.mxu0 %v532
    %576 = vmatpush1.msra.mxu0 %v531
    %577 = vmatprep.subr.mxu0 %v534
    %578 = vmatpush1.msra.mxu0 %v533
    %579 = vmatprep.subr.mxu0 %v536
    %580 = vmatpush1.msra.mxu0 %v535
    %581 = vmatprep.subr.mxu0 %v538
    %582 = vmatpush1.msra.mxu0 %v537
    %583 = vmatprep.subr.mxu0 %v540
    %584 = vmatpush1.msra.mxu0 %v539
    %585 = vmatprep.subr.mxu0 %v542
    %586 = vmatpush1.msra.mxu0 %v541
    %587 = vmatprep.subr.mxu0 %v544
    %588 = vmatpush1.msra.mxu0 %v543
    %589 = vmatprep.subr.mxu0 %v546
    %590 = vmatpush1.msra.mxu0 %v545
    %591 = vmatprep.subr.mxu0 %v548
    %592 = vmatpush1.msra.mxu0 %v547
    %593 = vmatprep.subr.mxu0 %v550
    %594 = vmatpush1.msra.mxu0 %v549
    %595 = vmatprep.subr.mxu0 %v552
    %596 = vmatpush1.msra.mxu0 %v551
    %597 = vmatprep.subr.mxu0 0.0
    %598 = vmatpush1.msra.mxu0 0.0
    %599 = vmatprep.subr.mxu0 0.0
    %600 = vmatpush1.msra.mxu0 0.0
    %601 = vmatprep.subr.mxu0 0.0
    %602 = vmatpush1.msra.mxu0 0.0
    %603 = vmatprep.subr.mxu0 0.0
    %604 = vmatpush1.msra.mxu0 0.0
    %605 = vmatprep.subr.mxu0 0.0
    %606 = vmatpush1.msra.mxu0 0.0
    %607 = vmatprep.subr.mxu0 0.0
    %608 = vmatpush1.msra.mxu0 0.0
    %609 = vmatprep.subr.mxu0 0.0
    %610 = vmatpush1.msra.mxu0 0.0
    %611 = vmatprep.subr.mxu0 0.0
    %612 = vmatpush1.msra.mxu0 0.0
    %613 = vmatprep.subr.mxu0 0.0
    %614 = vmatpush1.msra.mxu0 0.0
    %615 = vmatprep.subr.mxu0 0.0
    %616 = vmatpush1.msra.mxu0 0.0
    %617 = vmatprep.subr.mxu0 0.0
    %618 = vmatpush1.msra.mxu0 0.0
    %619 = vmatprep.subr.mxu0 0.0
    %620 = vmatpush1.msra.mxu0 0.0
    %621 = vmatprep.subr.mxu0 0.0
    %622 = vmatpush1.msra.mxu0 0.0
    %623 = vmatprep.subr.mxu0 0.0
    %624 = vmatpush1.msra.mxu0 0.0
    %625 = vmatprep.subr.mxu0 0.0
    %626 = vmatpush1.msra.mxu0 0.0
    %627 = vmatprep.subr.mxu0 0.0
    %628 = vmatpush1.msra.mxu0 0.0
    %629 = vmatprep.mubr.f32.mxu0 0.0
    %630 = vmatmul.mubr.f32.gmra.mrb[0].mxu0 %v520
    %v631 = vpop.f32.mrb[0].mxu0
    %v632 = vadd.f32 %v558, %v631
    %v633 = vpop.f32.mrb[0].mxu0
    %v634 = vadd.f32 %v562, %v633
    %635 = vdwg.mxu0
    %v636 = vmax.f32 %v632, 0.0
    %v637 = vmax.f32 %v634, 0.0
    %v638 = vld [vmem:[#allocation10] sm:$0xff]
    %v639 = vld [vmem:[#allocation10 + $0x8] sm:$0xff]
    %v640 = vld [vmem:[#allocation10 + $0x10] sm:$0xff]
    %v641 = vld [vmem:[#allocation10 + $0x18] sm:$0xff]
    %v642 = vld [vmem:[#allocation10 + $0x20] sm:$0xff]
    %v643 = vld [vmem:[#allocation10 + $0x28] sm:$0xff]
    %v644 = vld [vmem:[#allocation10 + $0x30] sm:$0xff]
    %v645 = vld [vmem:[#allocation10 + $0x38] sm:$0xff]
    %v646 = vld [vmem:[#allocation10 + $0x40] sm:$0xff]
    %v647 = vld [vmem:[#allocation10 + $0x48] sm:$0xff]
    %v648 = vld [vmem:[#allocation10 + $0x50] sm:$0xff]
    %v649 = vld [vmem:[#allocation10 + $0x58] sm:$0xff]
    %v650 = vld [vmem:[#allocation10 + $0x60] sm:$0xff]
    %v651 = vld [vmem:[#allocation10 + $0x68] sm:$0xff]
    %v652 = vld [vmem:[#allocation10 + $0x70] sm:$0xff]
    %v653 = vld [vmem:[#allocation10 + $0x78] sm:$0xff]
    %v654 = vld [vmem:[#allocation10 + $0x80] sm:$0xff]
    %v655 = vld [vmem:[#allocation10 + $0x88] sm:$0xff]
    %v656 = vld [vmem:[#allocation10 + $0x90] sm:$0xff]
    %v657 = vld [vmem:[#allocation10 + $0x98] sm:$0xff]
    %v658 = vld [vmem:[#allocation10 + $0xa0] sm:$0xff]
    %v659 = vld [vmem:[#allocation10 + $0xa8] sm:$0xff]
    %v660 = vld [vmem:[#allocation10 + $0xb0] sm:$0xff]
    %v661 = vld [vmem:[#allocation10 + $0xb8] sm:$0xff]
    %v662 = vld [vmem:[#allocation10 + $0xc0] sm:$0xff]
    %v663 = vld [vmem:[#allocation10 + $0xc8] sm:$0xff]
    %v664 = vld [vmem:[#allocation10 + $0xd0] sm:$0xff]
    %v665 = vld [vmem:[#allocation10 + $0xd8] sm:$0xff]
    %v666 = vld [vmem:[#allocation10 + $0xe0] sm:$0xff]
    %v667 = vld [vmem:[#allocation10 + $0xe8] sm:$0xff]
    %v668 = vld [vmem:[#allocation10 + $0xf0] sm:$0xff]
    %v669 = vld [vmem:[#allocation10 + $0xf8] sm:$0xff]
    %v670 = vld [vmem:[%s8] sm:$0x1]
    %v672 = vlaneseq
    %v673 = vshrl.u32 %v672, 7
    %v674 = vsub.s32 0, %v673
    %v675 = vrot.slane %v670, %v674
    %677 = vmatprep.subr.mxu0 0.0
    %678 = vmatpush1.msra.mxu0 %v638
    %679 = vmatprep.subr.mxu0 0.0
    %680 = vmatpush1.msra.mxu0 %v639
    %681 = vmatprep.subr.mxu0 0.0
    %682 = vmatpush1.msra.mxu0 %v640
    %683 = vmatprep.subr.mxu0 0.0
    %684 = vmatpush1.msra.mxu0 %v641
    %685 = vmatprep.subr.mxu0 0.0
    %686 = vmatpush1.msra.mxu0 %v642
    %687 = vmatprep.subr.mxu0 0.0
    %688 = vmatpush1.msra.mxu0 %v643
    %689 = vmatprep.subr.mxu0 0.0
    %690 = vmatpush1.msra.mxu0 %v644
    %691 = vmatprep.subr.mxu0 0.0
    %692 = vmatpush1.msra.mxu0 %v645
    %693 = vmatprep.subr.mxu0 0.0
    %694 = vmatpush1.msra.mxu0 %v646
    %695 = vmatprep.subr.mxu0 0.0
    %696 = vmatpush1.msra.mxu0 %v647
    %697 = vmatprep.subr.mxu0 0.0
    %698 = vmatpush1.msra.mxu0 %v648
    %699 = vmatprep.subr.mxu0 0.0
    %700 = vmatpush1.msra.mxu0 %v649
    %701 = vmatprep.subr.mxu0 0.0
    %702 = vmatpush1.msra.mxu0 %v650
    %703 = vmatprep.subr.mxu0 0.0
    %704 = vmatpush1.msra.mxu0 %v651
    %705 = vmatprep.subr.mxu0 0.0
    %706 = vmatpush1.msra.mxu0 %v652
    %707 = vmatprep.subr.mxu0 0.0
    %708 = vmatpush1.msra.mxu0 %v653
    %709 = vmatprep.subr.mxu0 0.0
    %710 = vmatpush1.msra.mxu0 %v654
    %711 = vmatprep.subr.mxu0 0.0
    %712 = vmatpush1.msra.mxu0 %v655
    %713 = vmatprep.subr.mxu0 0.0
    %714 = vmatpush1.msra.mxu0 %v656
    %715 = vmatprep.subr.mxu0 0.0
    %716 = vmatpush1.msra.mxu0 %v657
    %717 = vmatprep.subr.mxu0 0.0
    %718 = vmatpush1.msra.mxu0 %v658
    %719 = vmatprep.subr.mxu0 0.0
    %720 = vmatpush1.msra.mxu0 %v659
    %721 = vmatprep.subr.mxu0 0.0
    %722 = vmatpush1.msra.mxu0 %v660
    %723 = vmatprep.subr.mxu0 0.0
    %724 = vmatpush1.msra.mxu0 %v661
    %725 = vmatprep.subr.mxu0 0.0
    %726 = vmatpush1.msra.mxu0 %v662
    %727 = vmatprep.subr.mxu0 0.0
    %728 = vmatpush1.msra.mxu0 %v663
    %729 = vmatprep.subr.mxu0 0.0
    %730 = vmatpush1.msra.mxu0 %v664
    %731 = vmatprep.subr.mxu0 0.0
    %732 = vmatpush1.msra.mxu0 %v665
    %733 = vmatprep.subr.mxu0 0.0
    %734 = vmatpush1.msra.mxu0 %v666
    %735 = vmatprep.subr.mxu0 0.0
    %736 = vmatpush1.msra.mxu0 %v667
    %737 = vmatprep.subr.mxu0 0.0
    %738 = vmatpush1.msra.mxu0 %v668
    %739 = vmatprep.subr.mxu0 0.0
    %740 = vmatpush1.msra.mxu0 %v669
    %741 = vmatprep.mubr.f32.mxu0 %v637
    %742 = vmatmul.mubr.f32.gmra.mrb[0].mxu0 %v636
    %v743 = vpop.f32.mrb[0].mxu0
    %v744 = vadd.f32 %v675, %v743
    %v745 = vpop.f32.mrb[0].mxu0
    %746 = vdwg.mxu0
    %v747 = vadd.f32 %v744, %v520
    %v748 = vld [vmem:[%s11] sm:$0x1]
    %v750 = vlaneseq
    %v751 = vshrl.u32 %v750, 7
    %v752 = vsub.s32 0, %v751
    %v753 = vrot.slane %v748, %v752
    %v755 = vmul.f32 %v747, %v753
    %v756 = vld [vmem:[%s12] sm:$0x1]
    %v758 = vlaneseq
    %v759 = vshrl.u32 %v758, 7
    %v760 = vsub.s32 0, %v759
    %v761 = vrot.slane %v756, %v760
    %v763 = vadd.f32 %v755, %v761
    %764 = vst [vmem:[#allocation11] sm:$0xff] %v763
    // Predicated region
    $region74: #{tpu_custom_call.1} parent=1 // pred_check
      _
    $region75: #{tpu_custom_call.1} parent=1 // pred_check_branch
      %766 = sbr.rel (0) target = $region77
    $region76: #{tpu_custom_call.1} parent=1 // pred_region
      %s768 = ssub.s32 128, 128
      %769 = vsyncadd [#allocation4], %s768
      %s771 = sshll.u32 [#allocation11], 4
      %s772 = int_to_ptr.vmem [resolvable:$true] %s771
      %774 = dma.vmem_to_hbm [thread:$0]  %s772, 128, %s13, [#allocation4]
    $region77: #{tpu_custom_call.1} parent=1 // pred_fallthru
      _
    // Predicated region
    $region78: #{tpu_custom_call.1} parent=1 // pred_check
      _
    $region79: #{tpu_custom_call.1} parent=1 // pred_check_branch
      %776 = sbr.rel (0) target = $region81
    $region80: #{tpu_custom_call.1} parent=1 // pred_region
      %777 = dma.done [#allocation4], 128
    $region81: #{tpu_custom_call.1} parent=1 // pred_fallthru
      _
    %778 = vsyncpa [#allocation3], 1
    %779 = vsyncpa [#allocation6], 1
    %780 = vsyncpa [#allocation9], 1
    %781 = vsyncpa [#allocation4], 1

</llo_original>
